<compile_context>
chip_gen: v5e
topology: v5e:2x2
jax: 0.10.0
libtpu: 0.0.40
codegen_flags: <defaults>
</compile_context>

<pallas_src>
import functools

import jax
import jax.numpy as jnp
from jax.experimental import pallas as pl
from jax.experimental.pallas import tpu as pltpu


def _round_up(x, m):
    return ((x + m - 1) // m) * m


_MIN_SPLIT_ROWS = 512              # only split for megacore once tiles are useful
_VMEM_LIMIT = 32 * 1024 * 1024     # explicit scoped-VMEM budget (safe on v5e/v6e/v7x)


# ---------------------------------------------------------------------------
# Fused 3-layer MLP on one batch tile -> f32 Q of shape (tb, action_dim).
#   x_ref  : (TB, S)   f32 or bf16
#   w1_ref : (S,  H1)  bf16
#   w2_ref : (H1, H2)  bf16
#   w3_ref : (H2, A)   bf16
#   b_ref  : (3,  LN)  f32 packed biases (row 0: b1, row 1: b2, row 2: b3)
# ---------------------------------------------------------------------------
def _mlp_q(x_ref, w1_ref, w2_ref, w3_ref, b_ref, h1, h2, a_dim):
    x = x_ref[...].astype(jnp.bfloat16)   # no-op if the caller already stores bf16
    b = b_ref[...]

    h = jnp.dot(x, w1_ref[...], preferred_element_type=jnp.float32)
    h = jnp.maximum(h + b[0:1, :h1], 0.0).astype(jnp.bfloat16)

    h = jnp.dot(h, w2_ref[...], preferred_element_type=jnp.float32)
    h = jnp.maximum(h + b[1:2, :h2], 0.0).astype(jnp.bfloat16)

    q = jnp.dot(h, w3_ref[...], preferred_element_type=jnp.float32) + b[2:3, :a_dim]
    return q


def _qnet_kernel(x_ref, w1_ref, w2_ref, w3_ref, b_ref, o_ref, *, h1, h2, a_dim):
    q = _mlp_q(x_ref, w1_ref, w2_ref, w3_ref, b_ref, h1, h2, a_dim)
    o_ref[...] = q.astype(o_ref.dtype)     # (tb, action_dim): no padded columns


def _qnet_argmax_kernel(x_ref, w1_ref, w2_ref, w3_ref, b_ref, a_ref, *, h1, h2, a_dim):
    q = _mlp_q(x_ref, w1_ref, w2_ref, w3_ref, b_ref, h1, h2, a_dim)
    # First-max argmax via max + iota + min (only float reduces; matches jnp.argmax).
    m = jnp.max(q, axis=-1, keepdims=True)
    idx = jax.lax.broadcasted_iota(jnp.float32, q.shape, 1)
    first_max = jnp.min(jnp.where(q == m, idx, float(a_dim)), axis=-1, keepdims=True)
    a_ref[...] = first_max.astype(jnp.int32)


# ---------------------------------------------------------------------------
# One-time parameter packing: bf16 weights, biases packed into one (3, LN) f32.
# ---------------------------------------------------------------------------
def pack_qnet_params(params):
    w1, b1 = params["w1"], params["b1"]
    w2, b2 = params["w2"], params["b2"]
    w3, b3 = params["w3"], params["b3"]
    h1, h2 = w1.shape[1], w2.shape[1]
    action_dim = w3.shape[1]
    ln = _round_up(max(h1, h2, action_dim), 128)

    b_pack = jnp.zeros((3, ln), jnp.float32)
    b_pack = b_pack.at[0, :h1].set(b1.reshape(-1))
    b_pack = b_pack.at[1, :h2].set(b2.reshape(-1))
    b_pack = b_pack.at[2, :action_dim].set(b3.reshape(-1))

    return {
        "w1": w1.astype(jnp.bfloat16),
        "w2": w2.astype(jnp.bfloat16),
        "w3": w3.astype(jnp.bfloat16),
        "b": b_pack,
        "action_dim": action_dim,
    }


# ---------------------------------------------------------------------------
# Wrapper helpers.
# ---------------------------------------------------------------------------
def _choose_batch_tile(B, batch_tile):
    tb = min(_round_up(B, 8), batch_tile)
    # Guarantee >= 2 grid steps when B is large enough so the "parallel" batch
    # axis actually shards across v7x's 2 TensorCores (no-op on v5e/v6e).
    if B >= 2 * _MIN_SPLIT_ROWS:
        tb = min(tb, _round_up(pl.cdiv(B, 2), 8))
    return tb


def _build_specs(B, S, w1, w2, w3, b, tb, out_last, out_dtype):
    def resident(arr):  # weights/bias: same block every step -> fetched once
        return pl.BlockSpec(arr.shape, lambda i: (0, 0))

    in_specs = [
        pl.BlockSpec((tb, S), lambda i: (i, 0)),   # only operand that scales with B
        resident(w1),
        resident(w2),
        resident(w3),
        resident(b),
    ]
    out_spec = pl.BlockSpec((tb, out_last), lambda i: (i, 0))
    out_shape = jax.ShapeDtypeStruct((B, out_last), out_dtype)
    return in_specs, out_spec, out_shape


def _compiler_params():
    return pltpu.CompilerParams(
        dimension_semantics=("parallel",),     # megacore sharding on v7x
        vmem_limit_bytes=_VMEM_LIMIT,
    )


# ---------------------------------------------------------------------------
# Forward pass: returns Q(s, .) of shape [B, action_dim], f32.
# ---------------------------------------------------------------------------
def qnet_forward(s, packed, *, batch_tile=4096):
    """s: [B, state_dim] f32 (or bf16); packed: pack_qnet_params output."""
    w1, w2, w3, b = packed["w1"], packed["w2"], packed["w3"], packed["b"]
    a_dim = packed["action_dim"]
    B, S = s.shape
    h1, h2 = w1.shape[1], w2.shape[1]

    tb = _choose_batch_tile(B, batch_tile)
    in_specs, out_spec, out_shape = _build_specs(B, S, w1, w2, w3, b, tb, a_dim, jnp.float32)
    kernel = functools.partial(_qnet_kernel, h1=h1, h2=h2, a_dim=a_dim)

    return pl.pallas_call(
        kernel,
        out_shape=out_shape,
        grid=(pl.cdiv(B, tb),),
        in_specs=in_specs,
        out_specs=out_spec,
        compiler_params=_compiler_params(),
    )(s, w1, w2, w3, b)


# ---------------------------------------------------------------------------
# Fused greedy action selection: returns argmax_a Q(s, a), shape [B], int32.
# (Shrinks the output stream to 1 value per row and removes the downstream op.)
# ---------------------------------------------------------------------------
def qnet_greedy_action(s, packed, *, batch_tile=4096):
    w1, w2, w3, b = packed["w1"], packed["w2"], packed["w3"], packed["b"]
    a_dim = packed["action_dim"]
    B, S = s.shape
    h1, h2 = w1.shape[1], w2.shape[1]

    tb = _choose_batch_tile(B, batch_tile)
    in_specs, out_spec, out_shape = _build_specs(B, S, w1, w2, w3, b, tb, 1, jnp.int32)
    kernel = functools.partial(_qnet_argmax_kernel, h1=h1, h2=h2, a_dim=a_dim)

    a = pl.pallas_call(
        kernel,
        out_shape=out_shape,
        grid=(pl.cdiv(B, tb),),
        in_specs=in_specs,
        out_specs=out_spec,
        compiler_params=_compiler_params(),
    )(s, w1, w2, w3, b)
    return a.reshape(B)


# ---------------------------------------------------------------------------
# Deterministic parameter init (mirrors orthogonal_init: orthogonal weights,
# gain=1.414, zero bias).  Weights stored as [in, out] for x @ W.
# ---------------------------------------------------------------------------
def orthogonal(key, out_features, in_features, gain=1.414, dtype=jnp.float32):
    rows, cols = out_features, in_features
    flip = rows < cols
    a = jax.random.normal(key, (max(rows, cols), min(rows, cols)), dtype=jnp.float32)
    q, r = jnp.linalg.qr(a)
    d = jnp.diagonal(r)
    q = q * jnp.where(d >= 0, 1.0, -1.0)[None, :]   # sign-safe (handles d == 0)
    w = q.T if flip else q                           # [out, in]
    return (gain * w).astype(dtype)


def init_qnet_params(key, state_dim, hid_shape, action_dim):
    dims = [state_dim] + list(hid_shape) + [action_dim]
    keys = jax.random.split(key, len(dims) - 1)
    params = {}
    for j in range(len(dims) - 1):
        w = orthogonal(keys[j], dims[j + 1], dims[j])   # [out, in]
        params[f"w{j+1}"] = w.T                          # stored [in, out]
        params[f"b{j+1}"] = jnp.zeros((1, dims[j + 1]), jnp.float32)
    return params


# ---------------------------------------------------------------------------
# Pure-JAX f32 reference for correctness check.
# ---------------------------------------------------------------------------
def qnet_ref(s, p):
    h = jnp.maximum(s @ p["w1"] + p["b1"], 0.0)
    h = jnp.maximum(h @ p["w2"] + p["b2"], 0.0)
    return h @ p["w3"] + p["b3"]


if __name__ == "__main__":
    key = jax.random.PRNGKey(0)
    k_param, k_input = jax.random.split(key)

    batch = 8
    state_dim = 16
    hid_shape = (32, 32)
    action_dim = 4

    params = init_qnet_params(k_param, state_dim, hid_shape, action_dim)
    packed = pack_qnet_params(params)   # one-time pack: bf16 weights, fused biases
    s = jax.random.normal(k_input, (batch, state_dim), dtype=jnp.float32)

    # Forward (Q-values).
    q = jax.block_until_ready(qnet_forward(s, packed))
    q_ref = qnet_ref(s, params)
    assert q.shape == (batch, action_dim)
    # bf16 matmul operands -> relaxed tolerance vs the f32 reference.
    assert jnp.allclose(q, q_ref, atol=5e-2, rtol=5e-2), "Q mismatch vs reference"

    # Fused greedy-action variant (same in-kernel math, so compare to the
    # kernel's own Q argmax; avoids bf16 tie-flip ambiguity vs the f32 ref).
    a = jax.block_until_ready(qnet_greedy_action(s, packed))
    assert a.shape == (batch,)
    assert jnp.array_equal(a, jnp.argmax(q, axis=-1).astype(jnp.int32)), "argmax mismatch"

    print("KERNEL_OK")
</pallas_src>

<mosaic_0001>
module attributes {stable_mosaic.version = 11 : i64} {
  func.func @_qnet_kernel(%arg0: i32, %arg1: memref<8x16xf32, #tpu.memory_space<vmem>>, %arg2: memref<16x32xbf16, #tpu.memory_space<vmem>>, %arg3: memref<32x32xbf16, #tpu.memory_space<vmem>>, %arg4: memref<32x4xbf16, #tpu.memory_space<vmem>>, %arg5: memref<3x128xf32, #tpu.memory_space<vmem>>, %arg6: memref<8x4xf32, #tpu.memory_space<vmem>>) attributes {dimension_semantics = [#tpu.dimension_semantics<parallel>], iteration_bounds = array<i64: 1>, scalar_prefetch = 0 : i64, scratch_operands = 0 : i64, tpu.core_type = #tpu.core_type<tc>, window_params = [{transform_indices = @transform_0, window_bounds = array<i64: 8, 16>}, {pipeline_mode = #tpu.pipeline_mode<synchronous>, transform_indices = @transform_1, window_bounds = array<i64: 16, 32>}, {pipeline_mode = #tpu.pipeline_mode<synchronous>, transform_indices = @transform_2, window_bounds = array<i64: 32, 32>}, {pipeline_mode = #tpu.pipeline_mode<synchronous>, transform_indices = @transform_3, window_bounds = array<i64: 32, 4>}, {pipeline_mode = #tpu.pipeline_mode<synchronous>, transform_indices = @transform_4, window_bounds = array<i64: 3, 128>}, {transform_indices = @transform_5, window_bounds = array<i64: 8, 4>}]} {
    %c0 = arith.constant 0 : index
    %c0_0 = arith.constant 0 : index
    %0 = vector.load %arg1[%c0, %c0_0] : memref<8x16xf32, #tpu.memory_space<vmem>>, vector<8x16xf32>
    %1 = arith.truncf %0 : vector<8x16xf32> to vector<8x16xbf16>
    %c0_1 = arith.constant 0 : index
    %c0_2 = arith.constant 0 : index
    %2 = vector.load %arg5[%c0_1, %c0_2] : memref<3x128xf32, #tpu.memory_space<vmem>>, vector<3x128xf32>
    %c0_3 = arith.constant 0 : index
    %c0_4 = arith.constant 0 : index
    %3 = vector.load %arg2[%c0_3, %c0_4] : memref<16x32xbf16, #tpu.memory_space<vmem>>, vector<16x32xbf16>
    %cst = arith.constant dense<0.000000e+00> : vector<8x32xf32>
    %4 = tpu.matmul %1, %3, %cst {dimension_numbers = #tpu.dot_dimension_numbers<[1], [0], [0], [1], [0, 0, 1, 1], [], []>} : vector<8x16xbf16>, vector<16x32xbf16>, vector<8x32xf32> -> vector<8x32xf32>
    %5 = vector.extract_strided_slice %2 {offsets = [0, 0], sizes = [1, 32], strides = [1, 1]} : vector<3x128xf32> to vector<1x32xf32>
    %6 = vector.broadcast %5 : vector<1x32xf32> to vector<8x32xf32>
    %7 = arith.addf %4, %6 : vector<8x32xf32>
    %cst_5 = arith.constant 0.000000e+00 : f32
    %8 = vector.broadcast %cst_5 : f32 to vector<8x32xf32>
    %9 = arith.maximumf %7, %8 : vector<8x32xf32>
    %10 = arith.truncf %9 : vector<8x32xf32> to vector<8x32xbf16>
    %c0_6 = arith.constant 0 : index
    %c0_7 = arith.constant 0 : index
    %11 = vector.load %arg3[%c0_6, %c0_7] : memref<32x32xbf16, #tpu.memory_space<vmem>>, vector<32x32xbf16>
    %cst_8 = arith.constant dense<0.000000e+00> : vector<8x32xf32>
    %12 = tpu.matmul %10, %11, %cst_8 {dimension_numbers = #tpu.dot_dimension_numbers<[1], [0], [0], [1], [0, 0, 1, 1], [], []>} : vector<8x32xbf16>, vector<32x32xbf16>, vector<8x32xf32> -> vector<8x32xf32>
    %13 = vector.extract_strided_slice %2 {offsets = [1, 0], sizes = [1, 32], strides = [1, 1]} : vector<3x128xf32> to vector<1x32xf32>
    %14 = vector.broadcast %13 : vector<1x32xf32> to vector<8x32xf32>
    %15 = arith.addf %12, %14 : vector<8x32xf32>
    %cst_9 = arith.constant 0.000000e+00 : f32
    %16 = vector.broadcast %cst_9 : f32 to vector<8x32xf32>
    %17 = arith.maximumf %15, %16 : vector<8x32xf32>
    %18 = arith.truncf %17 : vector<8x32xf32> to vector<8x32xbf16>
    %c0_10 = arith.constant 0 : index
    %c0_11 = arith.constant 0 : index
    %19 = vector.load %arg4[%c0_10, %c0_11] : memref<32x4xbf16, #tpu.memory_space<vmem>>, vector<32x4xbf16>
    %cst_12 = arith.constant dense<0.000000e+00> : vector<8x4xf32>
    %20 = tpu.matmul %18, %19, %cst_12 {dimension_numbers = #tpu.dot_dimension_numbers<[1], [0], [0], [1], [0, 0, 1, 1], [], []>} : vector<8x32xbf16>, vector<32x4xbf16>, vector<8x4xf32> -> vector<8x4xf32>
    %21 = vector.extract_strided_slice %2 {offsets = [2, 0], sizes = [1, 4], strides = [1, 1]} : vector<3x128xf32> to vector<1x4xf32>
    %22 = vector.broadcast %21 : vector<1x4xf32> to vector<8x4xf32>
    %23 = arith.addf %20, %22 : vector<8x4xf32>
    %c0_13 = arith.constant 0 : index
    %c0_14 = arith.constant 0 : index
    %24 = vector.load %arg6[%c0_13, %c0_14] : memref<8x4xf32, #tpu.memory_space<vmem>>, vector<8x4xf32>
    tpu.vector_store %arg6[%c0_13, %c0_14], %23 {strides = array<i32>} : memref<8x4xf32, #tpu.memory_space<vmem>>, vector<8x4xf32>,
    return
  }
  func.func @transform_0(%arg0: i32) -> (i32, i32) {
    %c0_i32 = arith.constant 0 : i32
    %c0_i32_0 = arith.constant 0 : i32
    return %arg0, %c0_i32 : i32, i32
  }
  func.func @transform_1(%arg0: i32) -> (i32, i32) {
    %c0_i32 = arith.constant 0 : i32
    %c0_i32_0 = arith.constant 0 : i32
    %c0_i32_1 = arith.constant 0 : i32
    return %c0_i32, %c0_i32_0 : i32, i32
  }
  func.func @transform_2(%arg0: i32) -> (i32, i32) {
    %c0_i32 = arith.constant 0 : i32
    %c0_i32_0 = arith.constant 0 : i32
    %c0_i32_1 = arith.constant 0 : i32
    return %c0_i32, %c0_i32_0 : i32, i32
  }
  func.func @transform_3(%arg0: i32) -> (i32, i32) {
    %c0_i32 = arith.constant 0 : i32
    %c0_i32_0 = arith.constant 0 : i32
    %c0_i32_1 = arith.constant 0 : i32
    return %c0_i32, %c0_i32_0 : i32, i32
  }
  func.func @transform_4(%arg0: i32) -> (i32, i32) {
    %c0_i32 = arith.constant 0 : i32
    %c0_i32_0 = arith.constant 0 : i32
    %c0_i32_1 = arith.constant 0 : i32
    return %c0_i32, %c0_i32_0 : i32, i32
  }
  func.func @transform_5(%arg0: i32) -> (i32, i32) {
    %c0_i32 = arith.constant 0 : i32
    %c0_i32_0 = arith.constant 0 : i32
    return %arg0, %c0_i32 : i32, i32
  }
}

</mosaic_0001>

<llo_original>
// kernel: tpu_custom_call.1
$region0: #{tpu_custom_call.1}
  #allocation0 [shape = 'u32[]', space=smem, size = 0x4, offset = 0x4, fixed_abs, tag = 'smem constant byte address 0x4 - core index']
  #allocation1 [shape = 'u32[72,128]{1,0:T(1,128)}', space=vmem, size = 0x9000, scoped, tag = 'internal scratch']
  %s0 = inlined_call_operand.hbm [shape: f32[8,16], index: 0, kind: input, shape index: {}]
  %s1 = inlined_call_operand.hbm [shape: bf16[16,32], index: 1, kind: input, shape index: {}]
  %s2 = inlined_call_operand.vmem [shape: bf16[32,32], index: 2, kind: input, shape index: {}]
  %s3 = inlined_call_operand.vmem [shape: bf16[32,4], index: 3, kind: input, shape index: {}]
  %s4 = inlined_call_operand.hbm [shape: f32[3,128], index: 4, kind: input, shape index: {}]
  %s5 = inlined_call_operand.vmem [shape: f32[8,4], index: 5, kind: output, shape index: {}]
  %s6 = sld [smem:[#allocation0]]
  $region42: #{tpu_custom_call.1} parent=0
    _
  %s8 = ssub.s32 1, %s6
  %s9 = scalar_select 0, %s8, %s6
  $region1: #{tpu_custom_call.1} parent=0
    #allocation2 [shape = 'u8[4096]{0}', space=vmem, size = 0x1000, scoped, tag = 'input window, operand 0, single buffered']
    #allocation3 [shape = 's32[1]{0}', space=sflag, size = 0x4, scoped, tag = 'scoped memory for tpu_custom_call.1']
    #allocation4 [shape = 'u8[4096]{0}', space=vmem, size = 0x1000, scoped, tag = 'input window, operand 1, single buffered']
    #allocation5 [shape = 's32[1]{0}', space=sflag, size = 0x4, scoped, tag = 'scoped memory for tpu_custom_call.1']
    #allocation6 [shape = 'u8[2048]{0}', space=vmem, size = 0x800, scoped, tag = 'input window, operand 4, single buffered']
    %10 = vsyncpa [#allocation3], 0
    %11 = vsyncpa [#allocation5], 0
    // Predicated region
    $region2: #{tpu_custom_call.1} parent=1 // pred_check
      _
    $region3: #{tpu_custom_call.1} parent=1 // pred_check_branch
      %13 = sbr.rel (0) target = $region5
    $region4: #{tpu_custom_call.1} parent=1 // pred_region
      %15 = vsyncadd [#allocation3], 0
      %s17 = sshll.u32 %s0, 4
      %s18 = int_to_ptr.hbm [resolvable:$true] %s17
      %s19 = sshll.u32 [#allocation2], 4
      %s20 = int_to_ptr.vmem [resolvable:$true] %s19
      %22 = dma.hbm_to_vmem [thread:$0]  %s18, 128, %s20, [#allocation3]
    $region5: #{tpu_custom_call.1} parent=1 // pred_fallthru
      _
    // Predicated region
    $region6: #{tpu_custom_call.1} parent=1 // pred_check
      _
    $region7: #{tpu_custom_call.1} parent=1 // pred_check_branch
      %24 = sbr.rel (0) target = $region9
    $region8: #{tpu_custom_call.1} parent=1 // pred_region
      %26 = vsyncadd [#allocation5], 0
      %s27 = sshll.u32 %s1, 4
      %s28 = int_to_ptr.hbm [resolvable:$true] %s27
      %s29 = sshll.u32 [#allocation4], 4
      %s30 = int_to_ptr.vmem [resolvable:$true] %s29
      %35 = dma.hbm_to_vmem [thread:$0]  %s28, 128, %s30, [#allocation5], 64, 64, 4
    $region9: #{tpu_custom_call.1} parent=1 // pred_fallthru
      _
    // Predicated region
    $region10: #{tpu_custom_call.1} parent=1 // pred_check
      _
    $region11: #{tpu_custom_call.1} parent=1 // pred_check_branch
      %37 = sbr.rel (0) target = $region13
    $region12: #{tpu_custom_call.1} parent=1 // pred_region
      _
    $region13: #{tpu_custom_call.1} parent=1 // pred_fallthru
      _
    // Predicated region
    $region14: #{tpu_custom_call.1} parent=1 // pred_check
      _
    $region15: #{tpu_custom_call.1} parent=1 // pred_check_branch
      %39 = sbr.rel (0) target = $region17
    $region16: #{tpu_custom_call.1} parent=1 // pred_region
      _
    $region17: #{tpu_custom_call.1} parent=1 // pred_fallthru
      _
    // Predicated region
    $region18: #{tpu_custom_call.1} parent=1 // pred_check
      _
    $region19: #{tpu_custom_call.1} parent=1 // pred_check_branch
      %41 = sbr.rel (0) target = $region21
    $region20: #{tpu_custom_call.1} parent=1 // pred_region
      %43 = vsyncadd [#allocation5], 0
      %s45 = sshll.u32 %s4, 4
      %s46 = int_to_ptr.hbm [resolvable:$true] %s45
      %s47 = sshll.u32 [#allocation6], 4
      %s48 = int_to_ptr.vmem [resolvable:$true] %s47
      %50 = dma.hbm_to_vmem [thread:$0]  %s46, 64, %s48, [#allocation5]
    $region21: #{tpu_custom_call.1} parent=1 // pred_fallthru
      _
    // Predicated region
    $region22: #{tpu_custom_call.1} parent=1 // pred_check
      _
    $region23: #{tpu_custom_call.1} parent=1 // pred_check_branch
      %52 = sbr.rel (0) target = $region25
    $region24: #{tpu_custom_call.1} parent=1 // pred_region
      %54 = dma.done [#allocation3], 128
    $region25: #{tpu_custom_call.1} parent=1 // pred_fallthru
      _
    // Predicated region
    $region26: #{tpu_custom_call.1} parent=1 // pred_check
      _
    $region27: #{tpu_custom_call.1} parent=1 // pred_check_branch
      %56 = sbr.rel (0) target = $region29
    $region28: #{tpu_custom_call.1} parent=1 // pred_region
      %58 = dma.done [#allocation5], 128
    $region29: #{tpu_custom_call.1} parent=1 // pred_fallthru
      _
    // Predicated region
    $region30: #{tpu_custom_call.1} parent=1 // pred_check
      _
    $region31: #{tpu_custom_call.1} parent=1 // pred_check_branch
      %60 = sbr.rel (0) target = $region33
    $region32: #{tpu_custom_call.1} parent=1 // pred_region
      %62 = dma.done [#allocation5], 64
    $region33: #{tpu_custom_call.1} parent=1 // pred_fallthru
      _
    %v64 = vld [vmem:[#allocation2] sm:$0xff]
    %v65 = vpack.c.bf16 %v64, %v64
    %v66 = vld [vmem:[#allocation6] sm:$0x7]
    %v67 = vld [vmem:[#allocation4] sm:$0xf]
    %v68 = vld [vmem:[#allocation4 + $0x4] sm:$0xf]
    %v69 = vperm.slane %v66, 0
    %v72 = vunpack.c.l.b16 %v67
    %v73 = vunpack.c.l.b16 %v68
    %v74 = vpack.c.b16 %v73, %v72
    %vm76 = vcmask 130048
    %v78 = vsel %vm76, %v65, 0
    %80 = vmatpush.bf16.msra.mxu0 0
    %81 = vmatpush.bf16.msra.mxu0 0
    %82 = vmatpush.bf16.msra.mxu0 0
    %83 = vmatpush.bf16.msra.mxu0 0
    %84 = vmatpush.bf16.msra.mxu0 0
    %85 = vmatpush.bf16.msra.mxu0 0
    %86 = vmatpush.bf16.msra.mxu0 0
    %87 = vmatpush.bf16.msra.mxu0 %v74
    %88 = vmatmul.bf16.gmra.mxu0 %v78
    %v89 = vpop.f32.mrf.mxu0
    %v90 = vadd.f32 %v69, %v89
    %v91 = vpop.f32.mrf.mxu0
    %92 = vdwg.mxu0
    %v93 = vmax.f32 %v90, 0.0
    %v94 = vpack.c.bf16 %v93, %v93
    %v95 = vld [vmem:[%s2] sm:$0xf]
    %v96 = vld [vmem:[%s2 + $0x4] sm:$0xf]
    %v97 = vld [vmem:[%s2 + $0x8] sm:$0xf]
    %v98 = vld [vmem:[%s2 + $0xc] sm:$0xf]
    %v99 = vperm.slane %v66, 1
    %v104 = vunpack.c.l.b16 %v95
    %v105 = vunpack.c.l.b16 %v96
    %v106 = vunpack.c.l.b16 %v97
    %v107 = vunpack.c.l.b16 %v98
    %v108 = vpack.c.b16 %v105, %v104
    %v109 = vpack.c.b16 %v107, %v106
    %vm112 = vcmask 261120
    %v114 = vsel %vm112, %v94, 0
    %116 = vmatpush.bf16.msra.mxu0 0
    %117 = vmatpush.bf16.msra.mxu0 0
    %118 = vmatpush.bf16.msra.mxu0 0
    %119 = vmatpush.bf16.msra.mxu0 0
    %120 = vmatpush.bf16.msra.mxu0 0
    %121 = vmatpush.bf16.msra.mxu0 0
    %122 = vmatpush.bf16.msra.mxu0 %v109
    %123 = vmatpush.bf16.msra.mxu0 %v108
    %124 = vmatmul.bf16.gmra.mxu0 %v114
    %v125 = vpop.f32.mrf.mxu0
    %v126 = vadd.f32 %v99, %v125
    %v127 = vpop.f32.mrf.mxu0
    %128 = vdwg.mxu0
    %v129 = vmax.f32 %v126, 0.0
    %v130 = vpack.c.bf16 %v129, %v129
    %v131 = vld [vmem:[%s3] sm:$0xf]
    %v132 = vld [vmem:[%s3 + $0x4] sm:$0xf]
    %v133 = vld [vmem:[%s3 + $0x8] sm:$0xf]
    %v134 = vld [vmem:[%s3 + $0xc] sm:$0xf]
    %v135 = vperm.slane %v66, 2
    %v140 = vunpack.c.l.b16 %v131
    %v141 = vunpack.c.l.b16 %v132
    %v142 = vunpack.c.l.b16 %v133
    %v143 = vunpack.c.l.b16 %v134
    %v144 = vpack.c.b16 %v141, %v140
    %v145 = vpack.c.b16 %v143, %v142
    %v149 = vsel %vm112, %v130, 0
    %151 = vmatpush.bf16.msra.mxu0 0
    %152 = vmatpush.bf16.msra.mxu0 0
    %153 = vmatpush.bf16.msra.mxu0 0
    %154 = vmatpush.bf16.msra.mxu0 0
    %155 = vmatpush.bf16.msra.mxu0 0
    %156 = vmatpush.bf16.msra.mxu0 0
    %157 = vmatpush.bf16.msra.mxu0 %v145
    %158 = vmatpush.bf16.msra.mxu0 %v144
    %159 = vmatmul.bf16.gmra.mxu0 %v149
    %v160 = vpop.f32.mrf.mxu0
    %v161 = vadd.f32 %v135, %v160
    %v162 = vpop.f32.mrf.mxu0
    %163 = vdwg.mxu0
    %vm164 = vcmask 31744
    %165 = vst.msk [vmem:[%s5] sm:$0xff] %vm164, %v161
    // Predicated region
    $region34: #{tpu_custom_call.1} parent=1 // pred_check
      _
    $region35: #{tpu_custom_call.1} parent=1 // pred_check_branch
      %167 = sbr.rel (0) target = $region37
    $region36: #{tpu_custom_call.1} parent=1 // pred_region
      _
    $region37: #{tpu_custom_call.1} parent=1 // pred_fallthru
      _
    // Predicated region
    $region38: #{tpu_custom_call.1} parent=1 // pred_check
      _
    $region39: #{tpu_custom_call.1} parent=1 // pred_check_branch
      %169 = sbr.rel (0) target = $region41
    $region40: #{tpu_custom_call.1} parent=1 // pred_region
      _
    $region41: #{tpu_custom_call.1} parent=1 // pred_fallthru
      _
    %170 = vsyncpa [#allocation3], 1
    %171 = vsyncpa [#allocation5], 1

</llo_original>
